<compile_context>
chip_gen: v6e
topology: v6e:2x2x1
jax: 0.10.0
libtpu: 0.0.40
codegen_flags: <defaults>
</compile_context>

<pallas_src>
import functools
import math

import jax
import jax.numpy as jnp
from jax.experimental import pallas as pl
from jax.experimental.pallas import tpu as pltpu


def _round_up(x, m):
    return ((x + m - 1) // m) * m


def _choose_tile_h(H, W, Cp):
    """Largest row-tile TH (divisor of H) whose working set fits a conservative
    VMEM budget, keeping TH*W lane-dense (%128) and >=2 grid steps when possible."""
    budget = 14 * 2**20

    def footprint(TH):
        slab = 9 * Cp * (TH + 2) * W * (4 + 2)        # f32 taps + bf16 slab
        xblk = 2 * Cp * ((TH + 4) * W + 2) * 4        # double-buffered input tile
        oblk = 2 * Cp * TH * W * 4                    # double-buffered output tile
        actb = 2 * Cp * (TH + 2) * W * 4              # h1 / act values
        return slab + xblk + oblk + actb

    legal = [t for t in range(1, H + 1)
             if H % t == 0 and (t == H or (t * W) % 128 == 0)]
    tiled = [t for t in legal if H // t >= 2]
    fit = [t for t in tiled if footprint(t) <= budget]
    if fit:
        TH = max(fit)
    elif tiled:
        TH = min(tiled)
    else:
        TH = H
    return TH, footprint(TH)


def _residual_block_kernel(x_ref, w1_ref, w2_ref, m_ref, o_ref, *,
                           W, TH, n_th, op_dtype):
    """One (batch, row-tile) per grid step.

    x_ref : (Cp, (TH+4)*W + 2)  f32, vertically halo'd input tile, flattened
            over (TH+4, W) with one zero element front/back so every 3x3 tap
            is a single contiguous lane-slice.
    w*_ref: (Cp, 9*Cp)  bf16 conv weights, K ordered (ky, kx, cin).
    m_ref : (2, (TH+2)*W)  0/1 masks killing the horizontal wrap-around of
            the flattened shifts (row 0: kx=0 taps, row 1: kx=2 taps).
    o_ref : (Cp, TH*W)  f32 output tile.
    """
    THW = TH * W
    L1 = (TH + 2) * W                       # conv1 output rows incl. halo
    cp = x_ref.shape[0]

    xv = x_ref[...]                         # (Cp, (TH+4)*W + 2) f32
    ml = m_ref[0:1, :]                      # (1, L1)
    mr = m_ref[1:2, :]

    def conv3x3(src, w_ref, out_len):
        # Implicit im2col: 9 shifted lane-slices stacked into (9*Cp, out_len),
        # then a single bf16 MXU contraction with f32 accumulation.
        taps = []
        for k in range(9):
            ky, kx = divmod(k, 3)
            off = ky * W + kx
            t = src[:, off:off + out_len]
            if kx == 0:
                t = t * ml[:, :out_len]     # kill wrapped-in left border
            elif kx == 2:
                t = t * mr[:, :out_len]     # kill wrapped-in right border
            taps.append(t)
        patches = jnp.concatenate(taps, axis=0).astype(op_dtype)
        return jnp.dot(w_ref[...], patches,
                       preferred_element_type=jnp.float32)   # (Cp, out_len) f32

    # ---- conv1 + ReLU over TH+2 rows (one halo row above/below the tile) ----
    h1 = conv3x3(xv, w1_ref, L1)
    act = jnp.maximum(h1, 0.0)

    # Halo activation rows falling outside the image must be exactly zero
    # (conv2 sees zero padding in the reference).  Only the first/last tiles
    # are affected; the select is per-step cheap and parallel-safe.
    th = pl.program_id(1)
    idx = jax.lax.broadcasted_iota(jnp.int32, (1, L1), 1)
    dead = ((th == 0) & (idx < W)) | ((th == n_th - 1) & (idx >= (TH + 1) * W))
    act = jnp.where(dead, 0.0, act)

    # One zero element front/back so conv2's corner taps stay in bounds; the
    # wrapped values they would read are masked anyway.
    zpad = jnp.zeros((cp, 1), act.dtype)
    act_p = jnp.concatenate([zpad, act, zpad], axis=1)        # (Cp, L1 + 2)

    # ---- conv2 over the TH interior rows ----
    h2 = conv3x3(act_p, w2_ref, THW)

    # ---- residual add: identity = interior rows of the padded input tile ----
    identity = xv[:, 2 * W + 1: 2 * W + 1 + THW]
    o_ref[...] = (h2 + identity).astype(o_ref.dtype)


def residual_block(x_nchw, w1_oihw, w2_oihw, *, op_dtype=jnp.bfloat16):
    """x: (N, C, H, W); w*: (Cout, Cin, 3, 3). Returns (N, Cout, H, W)."""
    N, C, H, W = x_nchw.shape
    cout, cin, kh, kw = w1_oihw.shape
    assert (kh, kw) == (3, 3) and cin == C and cout == C, \
        "residual add requires Cin == Cout and 3x3 kernels"

    Cp = _round_up(C, 8)                    # sublane-dense channels
    TH, footprint = _choose_tile_h(H, W, Cp)
    n_th = H // TH
    THW = TH * W
    L1 = (TH + 2) * W
    tile_flat = (TH + 4) * W + 2

    # ---- pad channels to Cp (zeros are inert through both convs + residual) --
    xc = jnp.pad(x_nchw, ((0, 0), (0, Cp - C), (0, 0), (0, 0)))
    w1p = jnp.pad(w1_oihw, ((0, Cp - C), (0, Cp - C), (0, 0), (0, 0)))
    w2p = jnp.pad(w2_oihw, ((0, Cp - C), (0, Cp - C), (0, 0), (0, 0)))

    # ---- materialize vertically halo'd row tiles (rectangular BlockSpecs) ----
    xp2 = jnp.pad(xc, ((0, 0), (0, 0), (2, 2), (0, 0)))        # (N, Cp, H+4, W)
    xt = jnp.stack([xp2[:, :, t * TH: t * TH + TH + 4, :] for t in range(n_th)],
                   axis=1)                                     # (N, n_th, Cp, TH+4, W)
    xt = xt.reshape(N, n_th, Cp, (TH + 4) * W)
    xt = jnp.pad(xt, ((0, 0), (0, 0), (0, 0), (1, 1)))         # (N, n_th, Cp, tile_flat)

    # OIHW -> (Cp, 9*Cp), K ordered (ky, kx, cin); bf16 operands for the MXU.
    w1r = jnp.transpose(w1p, (0, 2, 3, 1)).reshape(Cp, 9 * Cp).astype(op_dtype)
    w2r = jnp.transpose(w2p, (0, 2, 3, 1)).reshape(Cp, 9 * Cp).astype(op_dtype)

    # 0/1 masks killing the horizontal wrap-around of the flattened shifts.
    col = jnp.arange(L1, dtype=jnp.int32) % W
    emask = jnp.stack([col != 0, col != W - 1]).astype(x_nchw.dtype)   # (2, L1)

    kernel = functools.partial(_residual_block_kernel, W=W, TH=TH, n_th=n_th,
                               op_dtype=op_dtype)

    flops = N * n_th * (2 * Cp * 9 * Cp * L1 + 2 * Cp * 9 * Cp * THW)
    bytes_accessed = (xt.size * 4 + N * Cp * H * W * 4
                      + (w1r.size + w2r.size) * 2 + emask.size * 4)
    vmem_limit = int(max(32 * 2**20, min(96 * 2**20, 2 * footprint)))

    out_flat = pl.pallas_call(
        kernel,
        out_shape=jax.ShapeDtypeStruct((N, Cp, H * W), x_nchw.dtype),
        grid_spec=pltpu.PrefetchScalarGridSpec(
            num_scalar_prefetch=0,
            grid=(N, n_th),                 # N * n_th steps: >=2 per TC on v7x
            in_specs=[
                pl.BlockSpec((None, None, Cp, tile_flat), lambda n, t: (n, t, 0, 0)),
                pl.BlockSpec((Cp, 9 * Cp), lambda n, t: (0, 0)),
                pl.BlockSpec((Cp, 9 * Cp), lambda n, t: (0, 0)),
                pl.BlockSpec((2, L1), lambda n, t: (0, 0)),
            ],
            out_specs=pl.BlockSpec((None, Cp, THW), lambda n, t: (n, 0, t)),
        ),
        compiler_params=pltpu.CompilerParams(
            dimension_semantics=("parallel", "parallel"),
            vmem_limit_bytes=vmem_limit),
        cost_estimate=pl.CostEstimate(flops=int(flops), transcendentals=0,
                                      bytes_accessed=int(bytes_accessed)),
    )(xt, w1r, w2r, emask)

    return out_flat.reshape(N, Cp, H, W)[:, :cout]


def _reference(x, w1, w2):
    dn = ("NCHW", "OIHW", "NCHW")
    y = jax.lax.conv_general_dilated(x, w1, (1, 1), ((1, 1), (1, 1)),
                                     dimension_numbers=dn)
    y = jnp.maximum(y, 0.0)
    y = jax.lax.conv_general_dilated(y, w2, (1, 1), ((1, 1), (1, 1)),
                                     dimension_numbers=dn)
    return y + x


if __name__ == "__main__":
    key = jax.random.PRNGKey(0)
    k1, k2, k3 = jax.random.split(key, 3)

    # Small shapes consistent with the module (residual add => Cin == Cout).
    N, C, H, W = 2, 4, 16, 16
    Cout = C

    x = jax.random.normal(k1, (N, C, H, W), jnp.float32)
    w1 = jax.random.normal(k2, (Cout, C, 3, 3), jnp.float32) / math.sqrt(C * 9)
    w2 = jax.random.normal(k3, (Cout, Cout, 3, 3), jnp.float32) / math.sqrt(Cout * 9)

    out = residual_block(x, w1, w2)
    out = jax.block_until_ready(out)

    ref = _reference(x, w1, w2)
    assert out.shape == (N, Cout, H, W)
    # Tolerance loosened per review: bf16 MXU operands (f32 accumulation).
    assert jnp.allclose(out, ref, rtol=5e-2, atol=5e-2), \
        float(jnp.max(jnp.abs(out - ref)))

    print("KERNEL_OK")
</pallas_src>

<mosaic_0001>
module attributes {stable_mosaic.version = 11 : i64} {
  func.func @_residual_block_kernel(%arg0: i32, %arg1: i32, %arg2: memref<1x1x8x194xf32, #tpu.memory_space<vmem>>, %arg3: memref<8x72xbf16, #tpu.memory_space<vmem>>, %arg4: memref<8x72xbf16, #tpu.memory_space<vmem>>, %arg5: memref<2x160xf32, #tpu.memory_space<vmem>>, %arg6: memref<1x8x128xf32, #tpu.memory_space<vmem>>) attributes {dimension_semantics = [#tpu.dimension_semantics<parallel>, #tpu.dimension_semantics<parallel>], iteration_bounds = array<i64: 2, 2>, scalar_prefetch = 0 : i64, scratch_operands = 0 : i64, tpu.core_type = #tpu.core_type<tc>, window_params = [{transform_indices = @transform_0, window_bounds = array<i64: 1, 1, 8, 194>}, {pipeline_mode = #tpu.pipeline_mode<synchronous>, transform_indices = @transform_1, window_bounds = array<i64: 8, 72>}, {pipeline_mode = #tpu.pipeline_mode<synchronous>, transform_indices = @transform_2, window_bounds = array<i64: 8, 72>}, {pipeline_mode = #tpu.pipeline_mode<synchronous>, transform_indices = @transform_3, window_bounds = array<i64: 2, 160>}, {transform_indices = @transform_4, window_bounds = array<i64: 1, 8, 128>}]} {
    %c0 = arith.constant 0 : index
    %c0_0 = arith.constant 0 : index
    %c0_1 = arith.constant 0 : index
    %c0_2 = arith.constant 0 : index
    %0 = vector.load %arg2[%c0, %c0_0, %c0_1, %c0_2] : memref<1x1x8x194xf32, #tpu.memory_space<vmem>>, vector<1x1x8x194xf32>
    %1 = vector.shape_cast %0 : vector<1x1x8x194xf32> to vector<8x194xf32>
    %c0_3 = arith.constant 0 : index
    %c0_4 = arith.constant 0 : index
    %2 = vector.load %arg5[%c0_3, %c0_4] : memref<2x160xf32, #tpu.memory_space<vmem>>, vector<1x160xf32>
    %c1 = arith.constant 1 : index
    %c0_5 = arith.constant 0 : index
    %3 = vector.load %arg5[%c1, %c0_5] : memref<2x160xf32, #tpu.memory_space<vmem>>, vector<1x160xf32>
    %4 = vector.extract_strided_slice %1 {offsets = [0, 0], sizes = [8, 160], strides = [1, 1]} : vector<8x194xf32> to vector<8x160xf32>
    %5 = vector.broadcast %2 : vector<1x160xf32> to vector<8x160xf32>
    %6 = arith.mulf %4, %5 : vector<8x160xf32>
    %7 = vector.extract_strided_slice %1 {offsets = [0, 1], sizes = [8, 160], strides = [1, 1]} : vector<8x194xf32> to vector<8x160xf32>
    %8 = vector.extract_strided_slice %1 {offsets = [0, 2], sizes = [8, 160], strides = [1, 1]} : vector<8x194xf32> to vector<8x160xf32>
    %9 = vector.broadcast %3 : vector<1x160xf32> to vector<8x160xf32>
    %10 = arith.mulf %8, %9 : vector<8x160xf32>
    %11 = vector.extract_strided_slice %1 {offsets = [0, 16], sizes = [8, 160], strides = [1, 1]} : vector<8x194xf32> to vector<8x160xf32>
    %12 = vector.broadcast %2 : vector<1x160xf32> to vector<8x160xf32>
    %13 = arith.mulf %11, %12 : vector<8x160xf32>
    %14 = vector.extract_strided_slice %1 {offsets = [0, 17], sizes = [8, 160], strides = [1, 1]} : vector<8x194xf32> to vector<8x160xf32>
    %15 = vector.extract_strided_slice %1 {offsets = [0, 18], sizes = [8, 160], strides = [1, 1]} : vector<8x194xf32> to vector<8x160xf32>
    %16 = vector.broadcast %3 : vector<1x160xf32> to vector<8x160xf32>
    %17 = arith.mulf %15, %16 : vector<8x160xf32>
    %18 = vector.extract_strided_slice %1 {offsets = [0, 32], sizes = [8, 160], strides = [1, 1]} : vector<8x194xf32> to vector<8x160xf32>
    %19 = vector.broadcast %2 : vector<1x160xf32> to vector<8x160xf32>
    %20 = arith.mulf %18, %19 : vector<8x160xf32>
    %21 = vector.extract_strided_slice %1 {offsets = [0, 33], sizes = [8, 160], strides = [1, 1]} : vector<8x194xf32> to vector<8x160xf32>
    %22 = vector.extract_strided_slice %1 {offsets = [0, 34], sizes = [8, 160], strides = [1, 1]} : vector<8x194xf32> to vector<8x160xf32>
    %23 = vector.broadcast %3 : vector<1x160xf32> to vector<8x160xf32>
    %24 = arith.mulf %22, %23 : vector<8x160xf32>
    %25 = tpu.concatenate %6, %7, %10, %13, %14, %17, %20, %21, %24 in 0 : vector<8x160xf32>, vector<8x160xf32>, vector<8x160xf32>, vector<8x160xf32>, vector<8x160xf32>, vector<8x160xf32>, vector<8x160xf32>, vector<8x160xf32>, vector<8x160xf32> -> vector<72x160xf32>
    %26 = arith.truncf %25 : vector<72x160xf32> to vector<72x160xbf16>
    %c0_6 = arith.constant 0 : index
    %c0_7 = arith.constant 0 : index
    %27 = vector.load %arg3[%c0_6, %c0_7] : memref<8x72xbf16, #tpu.memory_space<vmem>>, vector<8x72xbf16>
    %cst = arith.constant dense<0.000000e+00> : vector<8x160xf32>
    %28 = tpu.matmul %27, %26, %cst {dimension_numbers = #tpu.dot_dimension_numbers<[1], [0], [0], [1], [0, 0, 1, 1], [], []>} : vector<8x72xbf16>, vector<72x160xbf16>, vector<8x160xf32> -> vector<8x160xf32>
    %cst_8 = arith.constant 0.000000e+00 : f32
    %29 = vector.broadcast %cst_8 : f32 to vector<8x160xf32>
    %30 = arith.maximumf %28, %29 : vector<8x160xf32>
    %31 = tpu.iota {dimensions = array<i32: 1>} : vector<1x160xi32>
    %c0_i32 = arith.constant 0 : i32
    %32 = arith.cmpi eq, %arg1, %c0_i32 : i32
    %c16_i32 = arith.constant 16 : i32
    %33 = vector.broadcast %c16_i32 : i32 to vector<1x160xi32>
    %34 = arith.cmpi slt, %31, %33 : vector<1x160xi32>
    %35 = vector.broadcast %32 : i1 to vector<1x160xi1>
    %36 = arith.andi %35, %34 : vector<1x160xi1>
    %c1_i32 = arith.constant 1 : i32
    %37 = arith.cmpi eq, %arg1, %c1_i32 : i32
    %c144_i32 = arith.constant 144 : i32
    %38 = vector.broadcast %c144_i32 : i32 to vector<1x160xi32>
    %39 = arith.cmpi sge, %31, %38 : vector<1x160xi32>
    %40 = vector.broadcast %37 : i1 to vector<1x160xi1>
    %41 = arith.andi %40, %39 : vector<1x160xi1>
    %42 = arith.ori %36, %41 : vector<1x160xi1>
    %cst_9 = arith.constant 0.000000e+00 : f32
    %43 = vector.shape_cast %42 : vector<1x160xi1> to vector<1x160xi1>
    %44 = vector.broadcast %43 : vector<1x160xi1> to vector<8x160xi1>
    %45 = vector.broadcast %cst_9 : f32 to vector<8x160xf32>
    %46 = arith.select %44, %45, %30 : vector<8x160xi1>, vector<8x160xf32>
    %cst_10 = arith.constant 0.000000e+00 : f32
    %47 = vector.broadcast %cst_10 : f32 to vector<8x1xf32>
    %48 = tpu.concatenate %47, %46, %47 in 1 : vector<8x1xf32>, vector<8x160xf32>, vector<8x1xf32> -> vector<8x162xf32>
    %49 = vector.extract_strided_slice %48 {offsets = [0, 0], sizes = [8, 128], strides = [1, 1]} : vector<8x162xf32> to vector<8x128xf32>
    %50 = vector.extract_strided_slice %2 {offsets = [0, 0], sizes = [1, 128], strides = [1, 1]} : vector<1x160xf32> to vector<1x128xf32>
    %51 = vector.broadcast %50 : vector<1x128xf32> to vector<8x128xf32>
    %52 = arith.mulf %49, %51 : vector<8x128xf32>
    %53 = vector.extract_strided_slice %48 {offsets = [0, 1], sizes = [8, 128], strides = [1, 1]} : vector<8x162xf32> to vector<8x128xf32>
    %54 = vector.extract_strided_slice %48 {offsets = [0, 2], sizes = [8, 128], strides = [1, 1]} : vector<8x162xf32> to vector<8x128xf32>
    %55 = vector.extract_strided_slice %3 {offsets = [0, 0], sizes = [1, 128], strides = [1, 1]} : vector<1x160xf32> to vector<1x128xf32>
    %56 = vector.broadcast %55 : vector<1x128xf32> to vector<8x128xf32>
    %57 = arith.mulf %54, %56 : vector<8x128xf32>
    %58 = vector.extract_strided_slice %48 {offsets = [0, 16], sizes = [8, 128], strides = [1, 1]} : vector<8x162xf32> to vector<8x128xf32>
    %59 = vector.extract_strided_slice %2 {offsets = [0, 0], sizes = [1, 128], strides = [1, 1]} : vector<1x160xf32> to vector<1x128xf32>
    %60 = vector.broadcast %59 : vector<1x128xf32> to vector<8x128xf32>
    %61 = arith.mulf %58, %60 : vector<8x128xf32>
    %62 = vector.extract_strided_slice %48 {offsets = [0, 17], sizes = [8, 128], strides = [1, 1]} : vector<8x162xf32> to vector<8x128xf32>
    %63 = vector.extract_strided_slice %48 {offsets = [0, 18], sizes = [8, 128], strides = [1, 1]} : vector<8x162xf32> to vector<8x128xf32>
    %64 = vector.extract_strided_slice %3 {offsets = [0, 0], sizes = [1, 128], strides = [1, 1]} : vector<1x160xf32> to vector<1x128xf32>
    %65 = vector.broadcast %64 : vector<1x128xf32> to vector<8x128xf32>
    %66 = arith.mulf %63, %65 : vector<8x128xf32>
    %67 = vector.extract_strided_slice %48 {offsets = [0, 32], sizes = [8, 128], strides = [1, 1]} : vector<8x162xf32> to vector<8x128xf32>
    %68 = vector.extract_strided_slice %2 {offsets = [0, 0], sizes = [1, 128], strides = [1, 1]} : vector<1x160xf32> to vector<1x128xf32>
    %69 = vector.broadcast %68 : vector<1x128xf32> to vector<8x128xf32>
    %70 = arith.mulf %67, %69 : vector<8x128xf32>
    %71 = vector.extract_strided_slice %48 {offsets = [0, 33], sizes = [8, 128], strides = [1, 1]} : vector<8x162xf32> to vector<8x128xf32>
    %72 = vector.extract_strided_slice %48 {offsets = [0, 34], sizes = [8, 128], strides = [1, 1]} : vector<8x162xf32> to vector<8x128xf32>
    %73 = vector.extract_strided_slice %3 {offsets = [0, 0], sizes = [1, 128], strides = [1, 1]} : vector<1x160xf32> to vector<1x128xf32>
    %74 = vector.broadcast %73 : vector<1x128xf32> to vector<8x128xf32>
    %75 = arith.mulf %72, %74 : vector<8x128xf32>
    %76 = tpu.concatenate %52, %53, %57, %61, %62, %66, %70, %71, %75 in 0 : vector<8x128xf32>, vector<8x128xf32>, vector<8x128xf32>, vector<8x128xf32>, vector<8x128xf32>, vector<8x128xf32>, vector<8x128xf32>, vector<8x128xf32>, vector<8x128xf32> -> vector<72x128xf32>
    %77 = arith.truncf %76 : vector<72x128xf32> to vector<72x128xbf16>
    %c0_11 = arith.constant 0 : index
    %c0_12 = arith.constant 0 : index
    %78 = vector.load %arg4[%c0_11, %c0_12] : memref<8x72xbf16, #tpu.memory_space<vmem>>, vector<8x72xbf16>
    %cst_13 = arith.constant dense<0.000000e+00> : vector<8x128xf32>
    %79 = tpu.matmul %78, %77, %cst_13 {dimension_numbers = #tpu.dot_dimension_numbers<[1], [0], [0], [1], [0, 0, 1, 1], [], []>} : vector<8x72xbf16>, vector<72x128xbf16>, vector<8x128xf32> -> vector<8x128xf32>
    %80 = vector.extract_strided_slice %1 {offsets = [0, 33], sizes = [8, 128], strides = [1, 1]} : vector<8x194xf32> to vector<8x128xf32>
    %81 = arith.addf %79, %80 : vector<8x128xf32>
    %c0_14 = arith.constant 0 : index
    %c0_15 = arith.constant 0 : index
    %c0_16 = arith.constant 0 : index
    %82 = vector.load %arg6[%c0_14, %c0_15, %c0_16] : memref<1x8x128xf32, #tpu.memory_space<vmem>>, vector<1x8x128xf32>
    %83 = vector.shape_cast %82 : vector<1x8x128xf32> to vector<8x128xf32>
    %84 = vector.shape_cast %81 : vector<8x128xf32> to vector<1x8x128xf32>
    tpu.vector_store %arg6[%c0_14, %c0_15, %c0_16], %84 {strides = array<i32>} : memref<1x8x128xf32, #tpu.memory_space<vmem>>, vector<1x8x128xf32>,
    return
  }
  func.func @transform_0(%arg0: i32, %arg1: i32) -> (i32, i32, i32, i32) {
    %c0_i32 = arith.constant 0 : i32
    %c0_i32_0 = arith.constant 0 : i32
    %c0_i32_1 = arith.constant 0 : i32
    return %arg0, %arg1, %c0_i32, %c0_i32_0 : i32, i32, i32, i32
  }
  func.func @transform_1(%arg0: i32, %arg1: i32) -> (i32, i32) {
    %c0_i32 = arith.constant 0 : i32
    %c0_i32_0 = arith.constant 0 : i32
    %c0_i32_1 = arith.constant 0 : i32
    return %c0_i32, %c0_i32_0 : i32, i32
  }
  func.func @transform_2(%arg0: i32, %arg1: i32) -> (i32, i32) {
    %c0_i32 = arith.constant 0 : i32
    %c0_i32_0 = arith.constant 0 : i32
    %c0_i32_1 = arith.constant 0 : i32
    return %c0_i32, %c0_i32_0 : i32, i32
  }
  func.func @transform_3(%arg0: i32, %arg1: i32) -> (i32, i32) {
    %c0_i32 = arith.constant 0 : i32
    %c0_i32_0 = arith.constant 0 : i32
    %c0_i32_1 = arith.constant 0 : i32
    return %c0_i32, %c0_i32_0 : i32, i32
  }
  func.func @transform_4(%arg0: i32, %arg1: i32) -> (i32, i32, i32) {
    %c0_i32 = arith.constant 0 : i32
    %c0_i32_0 = arith.constant 0 : i32
    return %arg0, %c0_i32, %arg1 : i32, i32, i32
  }
}

</mosaic_0001>

<llo_original>
// kernel: tpu_custom_call.1
$region0: #{tpu_custom_call.1}
  #allocation0 [shape = 'u32[]', space=smem, size = 0x4, offset = 0x4, fixed_abs, tag = 'smem constant byte address 0x4 - core index']
  #allocation1 [shape = 'u32[144,128]{1,0:T(1,128)}', space=vmem, size = 0x12000, scoped, tag = 'internal scratch']
  %s0 = inlined_call_operand.hbm [shape: f32[2,2,8,194], index: 0, kind: input, shape index: {}]
  %s1 = inlined_call_operand.hbm [shape: bf16[8,72], index: 1, kind: input, shape index: {}]
  %s2 = inlined_call_operand.hbm [shape: bf16[8,72], index: 2, kind: input, shape index: {}]
  %s3 = inlined_call_operand.vmem [shape: f32[2,160], index: 3, kind: input, shape index: {}]
  %s4 = inlined_call_operand.hbm [shape: f32[2,8,256], index: 4, kind: output, shape index: {}]
  %s5 = sld [smem:[#allocation0]]
  $region61: #{tpu_custom_call.1} parent=0
    _
  %s7 = ssub.s32 1, %s5
  %s8 = scalar_select 0, %s7, %s5
  $region1: #{tpu_custom_call.1} parent=0
    #allocation2 [shape = 'u8[16384]{0}', space=vmem, size = 0x4000, scoped, tag = 'input window, operand 0']
    #allocation3 [shape = 's32[2]{0}', space=sflag, size = 0x8, scoped, tag = 'scoped memory for tpu_custom_call.1']
    #allocation4 [shape = 's32[2]{0}', space=sflag, size = 0x8, scoped, tag = 'scoped memory for tpu_custom_call.1']
    #allocation5 [shape = 'u8[2048]{0}', space=vmem, size = 0x800, scoped, tag = 'input window, operand 1, single buffered']
    #allocation6 [shape = 's32[1]{0}', space=sflag, size = 0x4, scoped, tag = 'scoped memory for tpu_custom_call.1']
    #allocation7 [shape = 'u8[2048]{0}', space=vmem, size = 0x800, scoped, tag = 'input window, operand 2, single buffered']
    #allocation8 [shape = 'u8[8192]{0}', space=vmem, size = 0x2000, scoped, tag = 'output window, operand 0']
    %9 = vsyncpa [#allocation3], 0
    %s10 = scalar_lea.sflag [#allocation3], 1
    %11 = vsyncpa %s10, 0
    %12 = vsyncpa [#allocation6], 0
    %13 = vsyncpa [#allocation4], 0
    %s14 = scalar_lea.sflag [#allocation4], 1
    %15 = vsyncpa %s14, 0
    loop: start=0, step=1, limit=6
    $region2: #{tpu_custom_call.1} parent=1 // loop_pre_header
      _
    $region3: #{tpu_custom_call.1} parent=1 // loop_header
      %s17 = sphi 0, %s21
      %p18 = scmp.ge.s32.totalorder %s17, 6
      %s24 = sphi 0, %s36
      %s25 = sphi 0, %s32
      %s26 = sphi 0, %s24
      %s27 = sphi 0, %s25
      %s28 = sphi 0, %s26
      %s29 = sphi 0, %s27
      %s41 = sphi 0, %s43
      %s44 = sphi 0, %s41
      %s45 = sphi 0, %s44
      %s61 = sphi 0, %s45
      %s65 = sphi 0, %s65
      %s67 = sphi 0, %s65
      %s68 = sphi 0, %s67
      %s82 = sphi 0, %s68
      %s86 = sphi 0, %s86
      %s88 = sphi 0, %s86
      %s89 = sphi 0, %s88
      %s103 = sphi 0, %s89
      %s107 = sphi 0, %s107
      %s109 = sphi 0, %s107
      %s110 = sphi 0, %s109
      %s124 = sphi 0, %s110
      %s132 = sphi 0, %s134
      %s135 = sphi 0, %s132
      %s136 = sphi 0, %s135
      %s152 = sphi 0, %s136
    $region4: #{tpu_custom_call.1} parent=1 // loop_header_branch
      %20 = sbr.rel (%p18) target = $region8
    $region5: #{tpu_custom_call.1} parent=1 // loop_body
      %s22 = ssub.s32 %s17, 1
      %s23 = ssub.s32 %s17, 2
      %s30 = sadd.s32 1, %s25
      %p31 = scmp.ge.s32.totalorder %s30, 2
      %s32 = scalar_select %p31, 0, %s30
      %s33 = sadd.s32 1, %s24
      %s34 = scalar_select %p31, %s33, %s24
      %p35 = scmp.ge.s32.totalorder %s34, 2
      %s36 = scalar_select %p35, 0, %s34
      %s37 = ssub.s32 %s24, %s36
      %s38 = ssub.s32 %s25, %s32
      %s39 = sor.u32 %s37, %s38
      %p40 = scmp.eq.s32.totalorder %s39, 0
      %s42 = sadd.s32 %s41, 1
      %s43 = scalar_select %p40, %s41, %s42
      %p46 = pneg %p40
      %p47 = scmp.eq.s32.totalorder %s17, 3
      %p48 = por %p46, %p47
      %p49 = scmp.ne.s32.totalorder %s41, %s44
      %p50 = scmp.eq.s32.totalorder %s17, 0
      %p51 = por %p49, %p50
      %p52 = scmp.ne.s32.totalorder %s41, %s44
      %p53 = scmp.eq.s32.totalorder %s22, 3
      %p54 = por %p52, %p53
      %p55 = scmp.ne.s32.totalorder %s44, %s45
      %p56 = scmp.eq.s32.totalorder %s22, 0
      %p57 = por %p55, %p56
      %p58 = scmp.ne.s32.totalorder %s44, %s45
      %p59 = scmp.eq.s32.totalorder %s23, 3
      %p60 = por %p58, %p59
      %p62 = scmp.ne.s32.totalorder %s45, %s61
      %p63 = scmp.eq.s32.totalorder %s23, 0
      %p64 = por %p62, %p63
      %s66 = sadd.s32 %s65, 1
      %p69 = scmp.eq.s32.totalorder %s17, 3
      %p70 = scmp.ne.s32.totalorder %s65, %s67
      %p71 = scmp.eq.s32.totalorder %s17, 0
      %p72 = por %p70, %p71
      %p73 = scmp.ne.s32.totalorder %s65, %s67
      %p74 = scmp.eq.s32.totalorder %s22, 3
      %p75 = por %p73, %p74
      %p76 = scmp.ne.s32.totalorder %s67, %s68
      %p77 = scmp.eq.s32.totalorder %s22, 0
      %p78 = por %p76, %p77
      %p79 = scmp.ne.s32.totalorder %s67, %s68
      %p80 = scmp.eq.s32.totalorder %s23, 3
      %p81 = por %p79, %p80
      %p83 = scmp.ne.s32.totalorder %s68, %s82
      %p84 = scmp.eq.s32.totalorder %s23, 0
      %p85 = por %p83, %p84
      %s87 = sadd.s32 %s86, 1
      %p90 = scmp.eq.s32.totalorder %s17, 3
      %p91 = scmp.ne.s32.totalorder %s86, %s88
      %p92 = scmp.eq.s32.totalorder %s17, 0
      %p93 = por %p91, %p92
      %p94 = scmp.ne.s32.totalorder %s86, %s88
      %p95 = scmp.eq.s32.totalorder %s22, 3
      %p96 = por %p94, %p95
      %p97 = scmp.ne.s32.totalorder %s88, %s89
      %p98 = scmp.eq.s32.totalorder %s22, 0
      %p99 = por %p97, %p98
      %p100 = scmp.ne.s32.totalorder %s88, %s89
      %p101 = scmp.eq.s32.totalorder %s23, 3
      %p102 = por %p100, %p101
      %p104 = scmp.ne.s32.totalorder %s89, %s103
      %p105 = scmp.eq.s32.totalorder %s23, 0
      %p106 = por %p104, %p105
      %s108 = sadd.s32 %s107, 1
      %p111 = scmp.eq.s32.totalorder %s17, 3
      %p112 = scmp.ne.s32.totalorder %s107, %s109
      %p113 = scmp.eq.s32.totalorder %s17, 0
      %p114 = por %p112, %p113
      %p115 = scmp.ne.s32.totalorder %s107, %s109
      %p116 = scmp.eq.s32.totalorder %s22, 3
      %p117 = por %p115, %p116
      %p118 = scmp.ne.s32.totalorder %s109, %s110
      %p119 = scmp.eq.s32.totalorder %s22, 0
      %p120 = por %p118, %p119
      %p121 = scmp.ne.s32.totalorder %s109, %s110
      %p122 = scmp.eq.s32.totalorder %s23, 3
      %p123 = por %p121, %p122
      %p125 = scmp.ne.s32.totalorder %s110, %s124
      %p126 = scmp.eq.s32.totalorder %s23, 0
      %p127 = por %p125, %p126
      %s128 = ssub.s32 %s24, %s36
      %s129 = ssub.s32 %s25, %s32
      %s130 = sor.u32 %s128, %s129
      %p131 = scmp.eq.s32.totalorder %s130, 0
      %s133 = sadd.s32 %s132, 1
      %s134 = scalar_select %p131, %s132, %s133
      %p137 = pneg %p131
      %p138 = scmp.eq.s32.totalorder %s17, 3
      %p139 = por %p137, %p138
      %p140 = scmp.ne.s32.totalorder %s132, %s135
      %p141 = scmp.eq.s32.totalorder %s17, 0
      %p142 = por %p140, %p141
      %p143 = scmp.ne.s32.totalorder %s132, %s135
      %p144 = scmp.eq.s32.totalorder %s22, 3
      %p145 = por %p143, %p144
      %p146 = scmp.ne.s32.totalorder %s135, %s136
      %p147 = scmp.eq.s32.totalorder %s22, 0
      %p148 = por %p146, %p147
      %p149 = scmp.ne.s32.totalorder %s135, %s136
      %p150 = scmp.eq.s32.totalorder %s23, 3
      %p151 = por %p149, %p150
      %p153 = scmp.ne.s32.totalorder %s136, %s152
      %p154 = scmp.eq.s32.totalorder %s23, 0
      %p155 = por %p153, %p154
      %p156 = scmp.le.s32.totalorder 1, %s17
      %p157 = scmp.lt.s32.totalorder %s17, 5
      %p158 = pnand %p156, %p157
      %p159 = pneg %p158
      // Predicated region
      $region9: #{tpu_custom_call.1} parent=5 // pred_check
        _
      $region10: #{tpu_custom_call.1} parent=5 // pred_check_branch
        %161 = sbr.rel (%p158) target = $region12
      $region11: #{tpu_custom_call.1} parent=5 // pred_region
        %s162 = ssub.s32 %s17, 1
        // Predicated region
        $region13: #{tpu_custom_call.1} parent=11 // pred_check
          %p163 = pneg %p78
        $region14: #{tpu_custom_call.1} parent=11 // pred_check_branch
          %165 = sbr.rel (%p163) target = $region16
        $region15: #{tpu_custom_call.1} parent=11 // pred_region
          %s167 = ssub.s32 64, 64
          %168 = vsyncadd [#allocation6], %s167
          %s170 = sshll.u32 [#allocation5], 4
          %s171 = int_to_ptr.vmem [resolvable:$true] %s170
          %173 = dma.hbm_to_vmem [thread:$0]  %s1, 64, %s171, [#allocation6]
        $region16: #{tpu_custom_call.1} parent=11 // pred_fallthru
          _
        // Predicated region
        $region17: #{tpu_custom_call.1} parent=11 // pred_check
          %p174 = pneg %p99
        $region18: #{tpu_custom_call.1} parent=11 // pred_check_branch
          %176 = sbr.rel (%p174) target = $region20
        $region19: #{tpu_custom_call.1} parent=11 // pred_region
          %s178 = ssub.s32 64, 64
          %179 = vsyncadd [#allocation6], %s178
          %s181 = sshll.u32 [#allocation7], 4
          %s182 = int_to_ptr.vmem [resolvable:$true] %s181
          %184 = dma.hbm_to_vmem [thread:$0]  %s2, 64, %s182, [#allocation6]
        $region20: #{tpu_custom_call.1} parent=11 // pred_fallthru
          _
        // Predicated region
        $region21: #{tpu_custom_call.1} parent=11 // pred_check
          %p185 = pneg %p120
        $region22: #{tpu_custom_call.1} parent=11 // pred_check_branch
          %187 = sbr.rel (%p185) target = $region24
        $region23: #{tpu_custom_call.1} parent=11 // pred_region
          _
        $region24: #{tpu_custom_call.1} parent=11 // pred_fallthru
          _
      $region12: #{tpu_custom_call.1} parent=5 // pred_fallthru
        _
      %p188 = scmp.lt.s32.totalorder %s17, 4
      // Predicated region
      $region25: #{tpu_custom_call.1} parent=5 // pred_check
        %p189 = pneg %p188
      $region26: #{tpu_custom_call.1} parent=5 // pred_check_branch
        %191 = sbr.rel (%p189) target = $region28
      $region27: #{tpu_custom_call.1} parent=5 // pred_region
        // Predicated region
        $region29: #{tpu_custom_call.1} parent=27 // pred_check
          %p192 = pneg %p51
        $region30: #{tpu_custom_call.1} parent=27 // pred_check_branch
          %194 = sbr.rel (%p192) target = $region32
        $region31: #{tpu_custom_call.1} parent=27 // pred_region
          %s195 = sand.u32 %s41, 1
          %s196 = scalar_lea.sflag [#allocation3], %s195
          %s197 = sand.u32 %s41, 1
          %s198 = smul.addr %s197, 16
          %s199 = scalar_lea.vmem [#allocation2], %s198
          %s201 = ssub.s32 256, 256
          %202 = vsyncadd %s196, %s201
          %s203 = smul.addr %s25, 2
          %s204 = smul.addr %s24, 4
          %s205 = sadd.s32 %s203, %s204
          %s206 = smul.addr %s205, 128
          %s207 = scalar_lea.hbm %s0, %s206
          %s209 = sshll.u32 %s199, 4
          %s210 = int_to_ptr.vmem [resolvable:$true] %s209
          %212 = dma.hbm_to_vmem [thread:$0]  %s207, 256, %s210, %s196
        $region32: #{tpu_custom_call.1} parent=27 // pred_fallthru
          _
      $region28: #{tpu_custom_call.1} parent=5 // pred_fallthru
        _
      %p213 = scmp.le.s32.totalorder 1, %s17
      %p214 = scmp.lt.s32.totalorder %s17, 5
      %p215 = pnand %p213, %p214
      %p216 = pneg %p215
      // Predicated region
      $region33: #{tpu_custom_call.1} parent=5 // pred_check
        _
      $region34: #{tpu_custom_call.1} parent=5 // pred_check_branch
        %218 = sbr.rel (%p215) target = $region36
      $region35: #{tpu_custom_call.1} parent=5 // pred_region
        %s219 = ssub.s32 %s17, 1
        %s220 = sand.u32 %s44, 1
        %s221 = scalar_lea.sflag [#allocation3], %s220
        %s222 = sand.u32 %s44, 1
        %s223 = smul.addr %s222, 16
        %s224 = scalar_lea.vmem [#allocation2], %s223
        // Predicated region
        $region37: #{tpu_custom_call.1} parent=35 // pred_check
          %p225 = pneg %p57
        $region38: #{tpu_custom_call.1} parent=35 // pred_check_branch
          %227 = sbr.rel (%p225) target = $region40
        $region39: #{tpu_custom_call.1} parent=35 // pred_region
          %228 = dma.done %s221, 256
        $region40: #{tpu_custom_call.1} parent=35 // pred_fallthru
          _
        // Predicated region
        $region41: #{tpu_custom_call.1} parent=35 // pred_check
          %p229 = pneg %p78
        $region42: #{tpu_custom_call.1} parent=35 // pred_check_branch
          %231 = sbr.rel (%p229) target = $region44
        $region43: #{tpu_custom_call.1} parent=35 // pred_region
          %232 = dma.done [#allocation6], 64
        $region44: #{tpu_custom_call.1} parent=35 // pred_fallthru
          _
        // Predicated region
        $region45: #{tpu_custom_call.1} parent=35 // pred_check
          %p233 = pneg %p99
        $region46: #{tpu_custom_call.1} parent=35 // pred_check_branch
          %235 = sbr.rel (%p233) target = $region48
        $region47: #{tpu_custom_call.1} parent=35 // pred_region
          %236 = dma.done [#allocation6], 64
        $region48: #{tpu_custom_call.1} parent=35 // pred_fallthru
          _
        %s237 = sand.u32 %s44, 1
        %s238 = scalar_lea.sflag [#allocation3], %s237
        %s239 = sand.u32 %s44, 1
        %s240 = smul.addr %s239, 16
        %s241 = scalar_lea.vmem [#allocation2], %s240
        %p242 = pneg %p57
        %p243 = pneg %p54
        %p244 = pneg %p78
        %p245 = pneg %p75
        %p246 = pneg %p99
        %p247 = pneg %p96
        %p248 = pneg %p120
        %p249 = pneg %p117
        %p250 = pneg %p148
        %p251 = pneg %p145
        %s252 = sand.u32 %s135, 1
        %s253 = scalar_lea.sflag [#allocation4], %s252
        %s254 = sand.u32 %s135, 1
        %s255 = smul.addr %s254, 8
        %s256 = scalar_lea.vmem [#allocation8], %s255
        %v258 = vld [vmem:[%s224] sm:$0xff]
        %v259 = vld [vmem:[%s224 + $0x8] sm:$0xff]
        %v260 = vld [vmem:[%s3] ss:$2 sm:$0x3]
        %s261 = scalar_lea.vmem %s3, 1
        %v262 = vld [vmem:[%s261] ss:$2 sm:$0x3]
        %v264 = vlaneseq
        %v265 = vshrl.u32 %v264, 7
        %v266 = vsub.s32 0, %v265
        %v267 = vrot.slane %v260, %v266
        %v268 = vlaneseq
        %v269 = vshrl.u32 %v268, 7
        %v270 = vsub.s32 1, %v269
        %v271 = vrot.slane %v260, %v270
        %v274 = vmul.f32 %v258, %v267
        %v275 = vmul.f32 %v259, %v271
        %v277 = vlaneseq
        %v278 = vshrl.u32 %v277, 7
        %v279 = vsub.s32 0, %v278
        %v280 = vrot.slane %v262, %v279
        %v281 = vlaneseq
        %v282 = vshrl.u32 %v281, 7
        %v283 = vsub.s32 1, %v282
        %v284 = vrot.slane %v262, %v283
        %285 = vrot.lane.b32.xlu0 %v280, 2
        %v286 = vpop.permute.xlu0 %285
        %287 = vrot.lane.b32.xlu0 %v284, 2
        %v288 = vpop.permute.xlu0 %287
        %vm289 = vcmask 15360
        %v290 = vsel %vm289, %v286, %v288
        %v293 = vmul.f32 %v258, %v286
        %v294 = vmul.f32 %v259, %v290
        %295 = vrot.lane.b32.xlu0 %v267, 16
        %v296 = vpop.permute.xlu0 %295
        %297 = vrot.lane.b32.xlu0 %v271, 16
        %v298 = vpop.permute.xlu0 %297
        %vm299 = vcmask 130048
        %v300 = vsel %vm299, %v296, %v298
        %v303 = vmul.f32 %v258, %v296
        %v304 = vmul.f32 %v259, %v300
        %305 = vrot.lane.b32.xlu0 %v280, 18
        %v306 = vpop.permute.xlu0 %305
        %307 = vrot.lane.b32.xlu0 %v284, 18
        %v308 = vpop.permute.xlu0 %307
        %vm309 = vcmask 146432
        %v310 = vsel %vm309, %v306, %v308
        %v313 = vmul.f32 %v258, %v306
        %v314 = vmul.f32 %v259, %v310
        %315 = vrot.lane.b32.xlu0 %v267, 32
        %v316 = vpop.permute.xlu0 %315
        %317 = vrot.lane.b32.xlu0 %v271, 32
        %v318 = vpop.permute.xlu0 %317
        %vm319 = vcmask 261120
        %v320 = vsel %vm319, %v316, %v318
        %v323 = vmul.f32 %v258, %v316
        %v324 = vmul.f32 %v259, %v320
        %325 = vrot.lane.b32.xlu0 %v280, 34
        %v326 = vpop.permute.xlu0 %325
        %327 = vrot.lane.b32.xlu0 %v284, 34
        %v328 = vpop.permute.xlu0 %327
        %vm329 = vcmask 277504
        %v330 = vsel %vm329, %v326, %v328
        %v333 = vmul.f32 %v258, %v326
        %v334 = vmul.f32 %v259, %v330
        %337 = vrot.lane.b32.xlu0 %v258, 127
        %v338 = vpop.permute.xlu0 %337
        %339 = vrot.lane.b32.xlu0 %v259, 127
        %v340 = vpop.permute.xlu0 %339
        %vm341 = vcmask 1039360
        %v342 = vsel %vm341, %v338, %v340
        %347 = vrot.lane.b32.xlu0 %v293, 126
        %v348 = vpop.permute.xlu0 %347
        %349 = vrot.lane.b32.xlu0 %v294, 126
        %v350 = vpop.permute.xlu0 %349
        %vm351 = vcmask 1031168
        %v352 = vsel %vm351, %v348, %v350
        %357 = vrot.lane.b32.xlu0 %v303, 112
        %v358 = vpop.permute.xlu0 %357
        %359 = vrot.lane.b32.xlu0 %v304, 112
        %v360 = vpop.permute.xlu0 %359
        %vm361 = vcmask 916480
        %v362 = vsel %vm361, %v358, %v360
        %365 = vrot.lane.b32.xlu0 %v258, 111
        %v366 = vpop.permute.xlu0 %365
        %367 = vrot.lane.b32.xlu0 %v259, 111
        %v368 = vpop.permute.xlu0 %367
        %vm369 = vcmask 908288
        %v370 = vsel %vm369, %v366, %v368
        %375 = vrot.lane.b32.xlu0 %v313, 110
        %v376 = vpop.permute.xlu0 %375
        %377 = vrot.lane.b32.xlu0 %v314, 110
        %v378 = vpop.permute.xlu0 %377
        %vm379 = vcmask 900096
        %v380 = vsel %vm379, %v376, %v378
        %385 = vrot.lane.b32.xlu0 %v323, 96
        %v386 = vpop.permute.xlu0 %385
        %387 = vrot.lane.b32.xlu0 %v324, 96
        %v388 = vpop.permute.xlu0 %387
        %vm389 = vcmask 785408
        %v390 = vsel %vm389, %v386, %v388
        %393 = vrot.lane.b32.xlu0 %v258, 95
        %v394 = vpop.permute.xlu0 %393
        %395 = vrot.lane.b32.xlu0 %v259, 95
        %v396 = vpop.permute.xlu0 %395
        %vm397 = vcmask 777216
        %v398 = vsel %vm397, %v394, %v396
        %403 = vrot.lane.b32.xlu0 %v333, 94
        %v404 = vpop.permute.xlu0 %403
        %405 = vrot.lane.b32.xlu0 %v334, 94
        %v406 = vpop.permute.xlu0 %405
        %vm407 = vcmask 769024
        %v408 = vsel %vm407, %v404, %v406
        %v411 = vpack.c.bf16 %v342, %v274
        %v412 = vpack.c.bf16 %v340, %v275
        %v413 = vpack.c.bf16 %v362, %v352
        %v414 = vpack.c.bf16 %v360, %v350
        %v415 = vpack.c.bf16 %v380, %v370
        %v416 = vpack.c.bf16 %v378, %v368
        %v417 = vpack.c.bf16 %v398, %v390
        %v418 = vpack.c.bf16 %v396, %v388
        %v419 = vpack.c.bf16 %v408, %v408
        %v420 = vpack.c.bf16 %v406, %v406
        %v421 = vld [vmem:[#allocation5] sm:$0xf]
        %vm422 = vcmask 588800
        %v424 = vsel %vm422, %v421, 0
        %vm426 = vcmask 1043456
        %v428 = vsel %vm426, %v419, 0
        %v431 = vsel %vm426, %v420, 0
        %433 = vmatprep.subr.bf16.mxu0 0
        %434 = vmatpush1.bf16.msra.mxu0 0
        %435 = vmatprep.subr.bf16.mxu0 0
        %436 = vmatpush1.bf16.msra.mxu0 0
        %437 = vmatprep.subr.bf16.mxu0 0
        %438 = vmatpush1.bf16.msra.mxu0 0
        %439 = vmatprep.subr.bf16.mxu0 %v431
        %440 = vmatpush1.bf16.msra.mxu0 %v428
        %441 = vmatprep.subr.bf16.mxu0 %v418
        %442 = vmatpush1.bf16.msra.mxu0 %v417
        %443 = vmatprep.subr.bf16.mxu0 %v416
        %444 = vmatpush1.bf16.msra.mxu0 %v415
        %445 = vmatprep.subr.bf16.mxu0 %v414
        %446 = vmatpush1.bf16.msra.mxu0 %v413
        %447 = vmatprep.subr.bf16.mxu0 %v412
        %448 = vmatpush1.bf16.msra.mxu0 %v411
        %449 = vmatprep.subr.bf16.mxu0 0
        %450 = vmatpush2.bf16.msra.mxu0 0
        %451 = vmatprep.subr.bf16.mxu0 0
        %452 = vmatpush2.bf16.msra.mxu0 0
        %453 = vmatprep.subr.bf16.mxu0 0
        %454 = vmatpush2.bf16.msra.mxu0 0
        %455 = vmatprep.subr.bf16.mxu0 0
        %456 = vmatpush2.bf16.msra.mxu0 0
        %457 = vmatprep.subr.bf16.mxu0 0
        %458 = vmatpush2.bf16.msra.mxu0 0
        %459 = vmatprep.subr.bf16.mxu0 0
        %460 = vmatpush2.bf16.msra.mxu0 0
        %461 = vmatprep.subr.bf16.mxu0 0
        %462 = vmatpush2.bf16.msra.mxu0 0
        %463 = vmatprep.subr.bf16.mxu0 0
        %464 = vmatpush2.bf16.msra.mxu0 0
        %465 = vmatprep.mubr.bf16.mxu0 0
        %466 = vmatmul.mubr.bf16.gmra.mxu0 %v424
        %v467 = vpop.f32.mrf.mxu0
        %v468 = vadd.f32 0.0, %v467
        %v469 = vpop.f32.mrf.mxu0
        %v470 = vadd.f32 0.0, %v469
        %v471 = vpop.f32.mrf.mxu0
        %v472 = vpop.f32.mrf.mxu0
        %473 = vdwg.mxu0
        %v474 = vmax.f32 %v468, 0.0
        %v475 = vmax.f32 %v470, 0.0
        %v476 = vlaneseq
        %v477 = vand.u32 %v476, 127
        %v478 = vadd.s32 %v477, 128
        %p479 = scmp.eq.s32.totalorder %s27, 0
        %vm480 = vcmp.lt.s32.totalorder %v477, 16
        %vm481 = vcmp.lt.s32.totalorder %v478, 16
        %s482 = scalar_select %p479, 1, 0
        %v483 = vstv %s482
        %vm484 = vcmp.eq.s32.totalorder %v483, 1
        %vm485 = vmand %vm484, %vm480
        %vm486 = vmand %vm484, %vm481
        %p487 = scmp.eq.s32.totalorder %s27, 1
        %vm488 = vcmp.ge.s32.totalorder %v477, 144
        %vm489 = vcmp.ge.s32.totalorder %v478, 144
        %s490 = scalar_select %p487, 1, 0
        %v491 = vstv %s490
        %vm492 = vcmp.eq.s32.totalorder %v491, 1
        %vm493 = vmand %vm492, %vm488
        %vm494 = vmand %vm492, %vm489
        %vm495 = vmor %vm485, %vm493
        %vm496 = vmor %vm486, %vm494
        %v497 = vsel %vm495, 1, 0
        %v498 = vsel %vm496, 1, 0
        %vm499 = vcmp.eq.s32.totalorder %v497, 1
        %vm500 = vcmp.eq.s32.totalorder %v498, 1
        %v501 = vsel %vm499, 0.0, %v474
        %v502 = vsel %vm500, 0.0, %v475
        %505 = vrot.lane.b32.xlu0 %v501, 1
        %v506 = vpop.permute.xlu0 %505
        %507 = vrot.lane.b32.xlu0 %v502, 1
        %v508 = vpop.permute.xlu0 %507
        %vm509 = vcmask 7168
        %v510 = vsel %vm509, %v506, %v508
        %v513 = vsel %vm509, 0.0, %v506
        %vm514 = vcmask 269312
        %v515 = vsel %vm514, %v510, 0.0
        %v516 = vmul.f32 %v513, %v267
        %v517 = vmul.f32 %v513, %v286
        %v518 = vmul.f32 %v515, %v286
        %v519 = vmul.f32 %v513, %v296
        %v520 = vmul.f32 %v515, %v296
        %v521 = vmul.f32 %v513, %v306
        %v522 = vmul.f32 %v515, %v306
        %v523 = vmul.f32 %v513, %v316
        %v524 = vmul.f32 %v515, %v316
        %v525 = vmul.f32 %v513, %v326
        %v526 = vmul.f32 %v515, %v326
        %529 = vrot.lane.b32.xlu0 %v513, 127
        %v530 = vpop.permute.xlu0 %529
        %531 = vrot.lane.b32.xlu0 %v515, 127
        %v532 = vpop.permute.xlu0 %531
        %v533 = vsel %vm341, %v530, %v532
        %537 = vrot.lane.b32.xlu0 %v517, 126
        %v538 = vpop.permute.xlu0 %537
        %539 = vrot.lane.b32.xlu0 %v518, 126
        %v540 = vpop.permute.xlu0 %539
        %v541 = vsel %vm351, %v538, %v540
        %545 = vrot.lane.b32.xlu0 %v519, 112
        %v546 = vpop.permute.xlu0 %545
        %547 = vrot.lane.b32.xlu0 %v520, 112
        %v548 = vpop.permute.xlu0 %547
        %v549 = vsel %vm361, %v546, %v548
        %551 = vrot.lane.b32.xlu0 %v513, 111
        %v552 = vpop.permute.xlu0 %551
        %553 = vrot.lane.b32.xlu0 %v515, 111
        %v554 = vpop.permute.xlu0 %553
        %v555 = vsel %vm369, %v552, %v554
        %559 = vrot.lane.b32.xlu0 %v521, 110
        %v560 = vpop.permute.xlu0 %559
        %561 = vrot.lane.b32.xlu0 %v522, 110
        %v562 = vpop.permute.xlu0 %561
        %v563 = vsel %vm379, %v560, %v562
        %567 = vrot.lane.b32.xlu0 %v523, 96
        %v568 = vpop.permute.xlu0 %567
        %569 = vrot.lane.b32.xlu0 %v524, 96
        %v570 = vpop.permute.xlu0 %569
        %v571 = vsel %vm389, %v568, %v570
        %573 = vrot.lane.b32.xlu0 %v513, 95
        %v574 = vpop.permute.xlu0 %573
        %575 = vrot.lane.b32.xlu0 %v515, 95
        %v576 = vpop.permute.xlu0 %575
        %v577 = vsel %vm397, %v574, %v576
        %581 = vrot.lane.b32.xlu0 %v525, 94
        %v582 = vpop.permute.xlu0 %581
        %583 = vrot.lane.b32.xlu0 %v526, 94
        %v584 = vpop.permute.xlu0 %583
        %v585 = vsel %vm407, %v582, %v584
        %v587 = vpack.c.bf16 %v533, %v516
        %v588 = vpack.c.bf16 %v549, %v541
        %v589 = vpack.c.bf16 %v563, %v555
        %v590 = vpack.c.bf16 %v577, %v571
        %v591 = vpack.c.bf16 %v585, %v585
        %v592 = vld [vmem:[#allocation7] sm:$0xf]
        %v594 = vsel %vm422, %v592, 0
        %v597 = vsel %vm426, %v591, 0
        %599 = vmatprep.subr.bf16.mxu0 0
        %600 = vmatpush1.bf16.msra.mxu0 0
        %601 = vmatprep.subr.bf16.mxu0 0
        %602 = vmatpush1.bf16.msra.mxu0 0
        %603 = vmatprep.subr.bf16.mxu0 0
        %604 = vmatpush1.bf16.msra.mxu0 0
        %605 = vmatprep.subr.bf16.mxu0 0
        %606 = vmatpush1.bf16.msra.mxu0 %v597
        %607 = vmatprep.subr.bf16.mxu0 0
        %608 = vmatpush1.bf16.msra.mxu0 %v590
        %609 = vmatprep.subr.bf16.mxu0 0
        %610 = vmatpush1.bf16.msra.mxu0 %v589
        %611 = vmatprep.subr.bf16.mxu0 0
        %612 = vmatpush1.bf16.msra.mxu0 %v588
        %613 = vmatprep.subr.bf16.mxu0 0
        %614 = vmatpush1.bf16.msra.mxu0 %v587
        %615 = vmatprep.subr.bf16.mxu0 0
        %616 = vmatpush2.bf16.msra.mxu0 0
        %617 = vmatprep.subr.bf16.mxu0 0
        %618 = vmatpush2.bf16.msra.mxu0 0
        %619 = vmatprep.subr.bf16.mxu0 0
        %620 = vmatpush2.bf16.msra.mxu0 0
        %621 = vmatprep.subr.bf16.mxu0 0
        %622 = vmatpush2.bf16.msra.mxu0 0
        %623 = vmatprep.subr.bf16.mxu0 0
        %624 = vmatpush2.bf16.msra.mxu0 0
        %625 = vmatprep.subr.bf16.mxu0 0
        %626 = vmatpush2.bf16.msra.mxu0 0
        %627 = vmatprep.subr.bf16.mxu0 0
        %628 = vmatpush2.bf16.msra.mxu0 0
        %629 = vmatprep.subr.bf16.mxu0 0
        %630 = vmatpush2.bf16.msra.mxu0 0
        %631 = vmatprep.mubr.bf16.mxu0 0
        %632 = vmatmul.mubr.bf16.gmra.mxu0 %v594
        %v633 = vpop.f32.mrf.mxu0
        %v634 = vadd.f32 %v398, %v633
        %v635 = vpop.f32.mrf.mxu0
        %v636 = vpop.f32.mrf.mxu0
        %v637 = vpop.f32.mrf.mxu0
        %638 = vdwg.mxu0
        %639 = vst [vmem:[%s256] sm:$0xff] %v634
        %s640 = sand.u32 %s135, 1
        %s641 = scalar_lea.sflag [#allocation4], %s640
        %s642 = sand.u32 %s135, 1
        %s643 = smul.addr %s642, 8
        %s644 = scalar_lea.vmem [#allocation8], %s643
        // Predicated region
        $region49: #{tpu_custom_call.1} parent=35 // pred_check
          %p645 = pneg %p145
        $region50: #{tpu_custom_call.1} parent=35 // pred_check_branch
          %647 = sbr.rel (%p645) target = $region52
        $region51: #{tpu_custom_call.1} parent=35 // pred_region
          %s649 = ssub.s32 128, 128
          %650 = vsyncadd %s641, %s649
          %s651 = smul.addr %s26, 2
          %s652 = sadd.s32 %s27, %s651
          %s653 = smul.addr %s652, 128
          %s654 = scalar_lea.hbm %s4, %s653
          %s656 = sshll.u32 %s644, 4
          %s657 = int_to_ptr.vmem [resolvable:$true] %s656
          %659 = dma.vmem_to_hbm [thread:$0]  %s657, 128, %s654, %s641
        $region52: #{tpu_custom_call.1} parent=35 // pred_fallthru
          _
      $region36: #{tpu_custom_call.1} parent=5 // pred_fallthru
        _
      %p660 = scmp.le.s32.totalorder 2, %s17
      // Predicated region
      $region53: #{tpu_custom_call.1} parent=5 // pred_check
        %p661 = pneg %p660
      $region54: #{tpu_custom_call.1} parent=5 // pred_check_branch
        %663 = sbr.rel (%p661) target = $region56
      $region55: #{tpu_custom_call.1} parent=5 // pred_region
        %s664 = ssub.s32 %s17, 2
        // Predicated region
        $region57: #{tpu_custom_call.1} parent=55 // pred_check
          %p665 = pneg %p151
        $region58: #{tpu_custom_call.1} parent=55 // pred_check_branch
          %667 = sbr.rel (%p665) target = $region60
        $region59: #{tpu_custom_call.1} parent=55 // pred_region
          %s668 = sand.u32 %s136, 1
          %s669 = scalar_lea.sflag [#allocation4], %s668
          %s670 = sand.u32 %s136, 1
          %s671 = smul.addr %s670, 8
          %s672 = scalar_lea.vmem [#allocation8], %s671
          %673 = dma.done %s669, 128
        $region60: #{tpu_custom_call.1} parent=55 // pred_fallthru
          _
      $region56: #{tpu_custom_call.1} parent=5 // pred_fallthru
        _
    $region6: #{tpu_custom_call.1} parent=1 // loop_footer
      %s21 = sadd.s32 1, %s17
    $region7: #{tpu_custom_call.1} parent=1 // loop_footer_branch
      %16 = sbr.rel target = $region3
    $region8: #{tpu_custom_call.1} parent=1 // loop_exit
      _
    %674 = vsyncpa [#allocation3], 1
    %s675 = scalar_lea.sflag [#allocation3], 1
    %676 = vsyncpa %s675, 1
    %677 = vsyncpa [#allocation6], 1
    %678 = vsyncpa [#allocation4], 1
    %s679 = scalar_lea.sflag [#allocation4], 1
    %680 = vsyncpa %s679, 1

</llo_original>
